<compile_context>
chip_gen: v5e
topology: v5e:2x2
jax: 0.10.0
libtpu: 0.0.40
codegen_flags: <defaults>
</compile_context>

<pallas_src>
import functools

import jax
import jax.numpy as jnp
from jax.experimental import pallas as pl
from jax.experimental.pallas import tpu as pltpu

_VMEM_LIMIT = 32 * 1024 * 1024          # safe scoped-VMEM cap on v5e/v6e/v7x
_TARGET_TILE_BYTES = 512 * 1024         # per-tile target => ~1 MiB in+out


def _copy_kernel(x_ref, o_ref):
    # Tiled path: output column block j == input column block j, so this is a
    # pure, lane-dense VMEM->VMEM block copy (only the last column tile's
    # store is masked).
    o_ref[...] = x_ref[...]


def _prefix_copy_kernel(x_ref, o_ref, *, l_out: int):
    # Small-l_out fallback: input block carries the full length; keep the
    # prefix with a static slice.
    o_ref[...] = x_ref[:, :l_out]


def _sublane_multiple(dtype) -> int:
    # Sub-32-bit dtypes pack along sublanes: 8 rows (f32), 16 (bf16), 32 (int8).
    itemsize = jnp.dtype(dtype).itemsize
    return max(8, 32 // itemsize)


def _chomp1d_tiled(x2: jax.Array, l_out: int) -> jax.Array:
    """Main path for l_out >= 128: 2-D (rows, 128-multiple columns) grid."""
    r, l = x2.shape
    itemsize = jnp.dtype(x2.dtype).itemsize
    sub = _sublane_multiple(x2.dtype)

    l_ceil = pl.cdiv(l_out, 128) * 128          # lane-padded output width

    # Column tile: multiple of 128, capped at 1024 lanes.
    tl = min(l_ceil, 1024)

    # Row tile: aim for ~_TARGET_TILE_BYTES per output tile, rounded to the
    # dtype-aware sublane multiple.  Full-extent rows are allowed when r is
    # small (block dim == array dim bypasses the divisibility requirement).
    rows_budget = max(sub, (_TARGET_TILE_BYTES // (tl * itemsize)) // sub * sub)
    tr = r if r <= rows_budget else rows_budget

    grid_rows = pl.cdiv(r, tr)
    grid_cols = pl.cdiv(l_out, tl)

    # Guarantee >= 2 grid steps when the shape allows it, so the software
    # pipeline exists and the "parallel" axes can shard across v7x's 2 TCs.
    if grid_rows * grid_cols < 2:
        if l_ceil >= 256:
            tl = 128 * pl.cdiv(pl.cdiv(l_out, 128), 2)
            grid_cols = pl.cdiv(l_out, tl)
        elif r >= 2 * sub:
            tr = sub * pl.cdiv(pl.cdiv(r, sub), 2)
            grid_rows = pl.cdiv(r, tr)

    read_cols = min(l, grid_cols * tl)          # actual HBM read window
    cost = pl.CostEstimate(
        flops=0,
        transcendentals=0,
        bytes_accessed=(r * read_cols + r * l_out) * itemsize,
    )

    return pl.pallas_call(
        _copy_kernel,
        out_shape=jax.ShapeDtypeStruct((r, l_out), x2.dtype),
        grid=(grid_rows, grid_cols),
        in_specs=[pl.BlockSpec((tr, tl), lambda i, j: (i, j))],
        out_specs=pl.BlockSpec((tr, tl), lambda i, j: (i, j)),
        compiler_params=pltpu.CompilerParams(
            dimension_semantics=("parallel", "parallel"),
            vmem_limit_bytes=_VMEM_LIMIT,
        ),
        cost_estimate=cost,
    )(x2)


def _chomp1d_small(x2: jax.Array, l_out: int) -> jax.Array:
    """Fallback for l_out < 128: row-only grid, full-L block, in-kernel slice."""
    r, l = x2.shape
    itemsize = jnp.dtype(x2.dtype).itemsize
    sub = _sublane_multiple(x2.dtype)

    rows_budget = max(sub, (_TARGET_TILE_BYTES // (l * itemsize)) // sub * sub)
    tr = r if r <= rows_budget else rows_budget
    grid_rows = pl.cdiv(r, tr)

    # Prefer >= 2 programs when the row count allows it (v7x core sharding).
    if grid_rows < 2 and r >= 2 * sub:
        tr = sub * pl.cdiv(pl.cdiv(r, sub), 2)
        grid_rows = pl.cdiv(r, tr)

    cost = pl.CostEstimate(
        flops=0,
        transcendentals=0,
        bytes_accessed=r * (l + l_out) * itemsize,   # full L is actually read
    )

    kernel = functools.partial(_prefix_copy_kernel, l_out=l_out)
    return pl.pallas_call(
        kernel,
        out_shape=jax.ShapeDtypeStruct((r, l_out), x2.dtype),
        grid=(grid_rows,),
        in_specs=[pl.BlockSpec((tr, l), lambda i: (i, 0))],
        out_specs=pl.BlockSpec((tr, l_out), lambda i: (i, 0)),
        compiler_params=pltpu.CompilerParams(
            dimension_semantics=("parallel",),
            vmem_limit_bytes=_VMEM_LIMIT,
        ),
        cost_estimate=cost,
    )(x2)


def chomp1d(x: jax.Array, chomp_size: int) -> jax.Array:
    """Pallas equivalent of PyTorch Chomp1d.forward: x[:, :, :-chomp_size]."""
    if chomp_size == 0:
        # NOTE: literal PyTorch x[:, :, :-0] is empty; in TCN usage padding=0
        # means "no chomp", so pass the tensor through untouched.
        return x
    assert chomp_size > 0, "chomp_size must be non-negative"
    n, c, l = x.shape
    l_out = l - chomp_size
    assert l_out > 0, "chomp_size must be smaller than the length dimension"

    r = n * c
    x2 = x.reshape(r, l)
    if l_out >= 128:
        y2 = _chomp1d_tiled(x2, l_out)
    else:
        y2 = _chomp1d_small(x2, l_out)
    return y2.reshape(n, c, l_out)


if __name__ == "__main__":
    key = jax.random.PRNGKey(0)
    k0, k1, k2, k3 = jax.random.split(key, 4)

    # --- Test 1: small TCN-like activation, l_out < 128 (fallback path) ---
    chomp_size = 3
    x = jax.random.normal(k0, (2, 4, 16), dtype=jnp.float32)
    y = jax.block_until_ready(chomp1d(x, chomp_size))
    assert y.shape == (2, 4, 16 - chomp_size), y.shape
    assert jnp.array_equal(y, x[:, :, :-chomp_size]), "mismatch (small path)"

    # --- Test 2: l_out == 128 exercises the tiled path, single tile ---
    chomp2 = 8
    x2 = jax.random.normal(k1, (2, 4, 136), dtype=jnp.float32)   # l_out = 128
    y2 = jax.block_until_ready(chomp1d(x2, chomp2))
    assert jnp.array_equal(y2, x2[:, :, :-chomp2]), "mismatch (tiled, aligned)"

    # --- Test 3: unaligned l_out, multi-column grid (masked last tile) ---
    chomp3 = 7
    x3 = jax.random.normal(k2, (4, 16, 1000), dtype=jnp.float32)  # l_out = 993
    y3 = jax.block_until_ready(chomp1d(x3, chomp3))
    assert y3.shape == (4, 16, 993), y3.shape
    assert jnp.array_equal(y3, x3[:, :, :-chomp3]), "mismatch (tiled, unaligned)"

    # --- Test 4: bf16 exercises dtype-aware sublane rounding ---
    chomp4 = 37
    x4 = jax.random.normal(k3, (2, 64, 512), dtype=jnp.float32).astype(jnp.bfloat16)
    y4 = jax.block_until_ready(chomp1d(x4, chomp4))
    assert jnp.array_equal(y4, x4[:, :, :-chomp4]), "mismatch (bf16 path)"

    # --- Test 5: chomp_size == 0 passthrough (TCN padding=0 case) ---
    y5 = jax.block_until_ready(chomp1d(x, 0))
    assert jnp.array_equal(y5, x)

    print("KERNEL_OK")
</pallas_src>

<mosaic_0001>
module attributes {stable_mosaic.version = 11 : i64} {
  func.func @_prefix_copy_kernel(%arg0: i32, %arg1: memref<8x16xf32, #tpu.memory_space<vmem>>, %arg2: memref<8x13xf32, #tpu.memory_space<vmem>>) attributes {dimension_semantics = [#tpu.dimension_semantics<parallel>], iteration_bounds = array<i64: 1>, scalar_prefetch = 0 : i64, scratch_operands = 0 : i64, tpu.core_type = #tpu.core_type<tc>, window_params = [{transform_indices = @transform_0, window_bounds = array<i64: 8, 16>}, {transform_indices = @transform_1, window_bounds = array<i64: 8, 13>}]} {
    %c0 = arith.constant 0 : index
    %c0_0 = arith.constant 0 : index
    %0 = vector.load %arg1[%c0, %c0_0] : memref<8x16xf32, #tpu.memory_space<vmem>>, vector<8x13xf32>
    %c0_1 = arith.constant 0 : index
    %c0_2 = arith.constant 0 : index
    %1 = vector.load %arg2[%c0_1, %c0_2] : memref<8x13xf32, #tpu.memory_space<vmem>>, vector<8x13xf32>
    tpu.vector_store %arg2[%c0_1, %c0_2], %0 {strides = array<i32>} : memref<8x13xf32, #tpu.memory_space<vmem>>, vector<8x13xf32>,
    return
  }
  func.func @transform_0(%arg0: i32) -> (i32, i32) {
    %c0_i32 = arith.constant 0 : i32
    %c0_i32_0 = arith.constant 0 : i32
    return %arg0, %c0_i32 : i32, i32
  }
  func.func @transform_1(%arg0: i32) -> (i32, i32) {
    %c0_i32 = arith.constant 0 : i32
    %c0_i32_0 = arith.constant 0 : i32
    return %arg0, %c0_i32 : i32, i32
  }
}

</mosaic_0001>

<llo_original>
// kernel: tpu_custom_call.1
$region0: #{tpu_custom_call.1}
  #allocation0 [shape = 'u32[]', space=smem, size = 0x4, offset = 0x4, fixed_abs, tag = 'smem constant byte address 0x4 - core index']
  #allocation1 [shape = 'u32[72,128]{1,0:T(1,128)}', space=vmem, size = 0x9000, scoped, tag = 'internal scratch']
  %s0 = inlined_call_operand.hbm [shape: f32[8,16], index: 0, kind: input, shape index: {}]
  %s1 = inlined_call_operand.hbm [shape: f32[8,13], index: 1, kind: output, shape index: {}]
  %s2 = sld [smem:[#allocation0]]
  $region18: #{tpu_custom_call.1} parent=0
    _
  %s4 = ssub.s32 1, %s2
  %s5 = scalar_select 0, %s4, %s2
  $region1: #{tpu_custom_call.1} parent=0
    #allocation2 [shape = 'u8[4096]{0}', space=vmem, size = 0x1000, scoped, tag = 'input window, operand 0, single buffered']
    #allocation3 [shape = 's32[1]{0}', space=sflag, size = 0x4, scoped, tag = 'scoped memory for tpu_custom_call.1']
    #allocation4 [shape = 's32[1]{0}', space=sflag, size = 0x4, scoped, tag = 'scoped memory for tpu_custom_call.1']
    #allocation5 [shape = 'u8[4096]{0}', space=vmem, size = 0x1000, scoped, tag = 'output window, operand 0, single buffered']
    %6 = vsyncpa [#allocation3], 0
    %7 = vsyncpa [#allocation4], 0
    // Predicated region
    $region2: #{tpu_custom_call.1} parent=1 // pred_check
      _
    $region3: #{tpu_custom_call.1} parent=1 // pred_check_branch
      %9 = sbr.rel (0) target = $region5
    $region4: #{tpu_custom_call.1} parent=1 // pred_region
      %11 = vsyncadd [#allocation3], 0
      %s13 = sshll.u32 %s0, 4
      %s14 = int_to_ptr.hbm [resolvable:$true] %s13
      %s15 = sshll.u32 [#allocation2], 4
      %s16 = int_to_ptr.vmem [resolvable:$true] %s15
      %18 = dma.hbm_to_vmem [thread:$0]  %s14, 128, %s16, [#allocation3]
    $region5: #{tpu_custom_call.1} parent=1 // pred_fallthru
      _
    // Predicated region
    $region6: #{tpu_custom_call.1} parent=1 // pred_check
      _
    $region7: #{tpu_custom_call.1} parent=1 // pred_check_branch
      %20 = sbr.rel (0) target = $region9
    $region8: #{tpu_custom_call.1} parent=1 // pred_region
      %22 = dma.done [#allocation3], 128
    $region9: #{tpu_custom_call.1} parent=1 // pred_fallthru
      _
    %v23 = vld [vmem:[#allocation2] sm:$0xff]
    %vm24 = vcmask 105472
    %25 = vst.msk [vmem:[#allocation5] sm:$0xff] %vm24, %v23
    // Predicated region
    $region10: #{tpu_custom_call.1} parent=1 // pred_check
      _
    $region11: #{tpu_custom_call.1} parent=1 // pred_check_branch
      %27 = sbr.rel (0) target = $region13
    $region12: #{tpu_custom_call.1} parent=1 // pred_region
      %29 = vsyncadd [#allocation4], 0
      %s31 = sshll.u32 [#allocation5], 4
      %s32 = int_to_ptr.vmem [resolvable:$true] %s31
      %s33 = sshll.u32 %s1, 4
      %s34 = int_to_ptr.hbm [resolvable:$true] %s33
      %36 = dma.vmem_to_hbm [thread:$0]  %s32, 128, %s34, [#allocation4]
    $region13: #{tpu_custom_call.1} parent=1 // pred_fallthru
      _
    // Predicated region
    $region14: #{tpu_custom_call.1} parent=1 // pred_check
      _
    $region15: #{tpu_custom_call.1} parent=1 // pred_check_branch
      %38 = sbr.rel (0) target = $region17
    $region16: #{tpu_custom_call.1} parent=1 // pred_region
      %40 = dma.done [#allocation4], 128
    $region17: #{tpu_custom_call.1} parent=1 // pred_fallthru
      _
    %41 = vsyncpa [#allocation3], 1
    %42 = vsyncpa [#allocation4], 1

</llo_original>
